<compile_context>
chip_gen: v6e
topology: v6e:2x2x1
jax: 0.10.0
libtpu: 0.0.40
codegen_flags: <defaults>
</compile_context>

<pallas_src>
import math
from functools import partial

import jax
import jax.numpy as jnp
import numpy as np
from jax.experimental import pallas as pl
from jax.experimental.pallas import tpu as pltpu


# ----------------------------------------------------------------------------
# Parameter setup (glue, plain JAX): orthonormal matrix generation from angles
# ----------------------------------------------------------------------------
def _orth_mtx_gen(angles, mus):
    """Batched orthonormal matrix generation (same Givens sequence as tansacnet).

    angles: (nblks, n*(n-1)//2), mus: (nblks, n)  ->  (nblks, n, n) float32
    R = diag(mus) @ prod(Givens rotations)
    """
    angles = angles.astype(jnp.float32)
    mus = mus.astype(jnp.float32)
    nblks = angles.shape[0]
    n = mus.shape[1]
    mat = jnp.tile(jnp.eye(n, dtype=jnp.float32)[None, :, :], (nblks, 1, 1))
    i_ang = 0
    for top in range(n - 1):
        vt = mat[:, top, :]
        for btm in range(top + 1, n):
            ang = angles[:, i_ang][:, None]
            c = jnp.cos(ang)
            s = jnp.sin(ang)
            vb = mat[:, btm, :]
            u = s * (vt + vb)
            vt = (c + s) * vt - u
            mat = mat.at[:, btm, :].set((c - s) * vb + u)
            i_ang += 1
        mat = mat.at[:, top, :].set(vt)
    return mus[:, :, None] * mat


def _round_up(x, m):
    return (x + m - 1) // m * m


# ----------------------------------------------------------------------------
# Pallas kernel: blocks-on-lanes per-block rotation (pure VPU FMAs)
#   y  : (nS, C,  TB)      rw : (ps, ps, TB)     ru : (pa, pa, TB)
#   out[s, q, b]        = sum_p y[s, p, b]      * rw[p, q, b]   (q <  ps)
#   out[s, ps + q, b]   = sum_p y[s, ps + p, b] * ru[p, q, b]   (q <  pa)
# ----------------------------------------------------------------------------
def _blk_rot_kernel(y_ref, rw_ref, ru_ref, o_ref, *, ps, pa):
    y = y_ref[...].astype(jnp.float32)   # (nS, C, TB)
    rw = rw_ref[...]                     # (ps, ps, TB) f32
    ru = ru_ref[...]                     # (pa, pa, TB) f32

    # Zs: accumulate over the ps input channels (unrolled; all lane-dense VPU ops).
    zs = y[:, 0, :][:, None, :] * rw[0][None, :, :]
    for p in range(1, ps):
        zs = zs + y[:, p, :][:, None, :] * rw[p][None, :, :]

    # Za: accumulate over the pa input channels.
    za = y[:, ps, :][:, None, :] * ru[0][None, :, :]
    for p in range(1, pa):
        za = za + y[:, ps + p, :][:, None, :] * ru[p][None, :, :]

    o_ref[...] = jnp.concatenate([zs, za], axis=1).astype(o_ref.dtype)


def _block_rotate(Y, Rw, Ru, ps, pa):
    """Y: (nS, C, nblks), Rw: (ps, ps, nblks), Ru: (pa, pa, nblks) -> (nS, C, nblks)."""
    nS, C, nblks = Y.shape
    out_dtype = Y.dtype

    # f32 bytes per block per grid step (input + output + both matrices),
    # x2 for double buffering; keep inside the smallest default scoped VMEM (v5e 16 MiB).
    per_blk_bytes = 4 * (2 * nS * C + ps * ps + pa * pa)
    budget = 10 * 1024 * 1024
    tb_cap = max(128, min(2048, (budget // (2 * per_blk_bytes)) // 128 * 128))

    if nblks <= 256:
        # Tiny problem: single step, block extent == full lane extent (layout-legal).
        tb = nblks
    else:
        # Multiple of 128, <= VMEM cap, and aim for >= 2 grid steps (v7x has 2 TCs).
        tb = min(tb_cap, max(128, ((nblks // 2) // 128) * 128))

    nblks_p = _round_up(nblks, tb)
    if nblks_p != nblks:
        pad = nblks_p - nblks
        Y = jnp.pad(Y, ((0, 0), (0, 0), (0, pad)))
        Rw = jnp.pad(Rw, ((0, 0), (0, 0), (0, pad)))
        Ru = jnp.pad(Ru, ((0, 0), (0, 0), (0, pad)))

    grid = (nblks_p // tb,)
    flops = 2 * nblks * nS * (ps * ps + pa * pa)
    bytes_accessed = 4 * (2 * nblks * nS * C + nblks * (ps * ps + pa * pa))

    Z = pl.pallas_call(
        partial(_blk_rot_kernel, ps=ps, pa=pa),
        out_shape=jax.ShapeDtypeStruct((nS, C, nblks_p), out_dtype),
        grid=grid,
        in_specs=[
            pl.BlockSpec((nS, C, tb), lambda b: (0, 0, b)),
            pl.BlockSpec((ps, ps, tb), lambda b: (0, 0, b)),
            pl.BlockSpec((pa, pa, tb), lambda b: (0, 0, b)),
        ],
        out_specs=pl.BlockSpec((nS, C, tb), lambda b: (0, 0, b)),
        compiler_params=pltpu.CompilerParams(dimension_semantics=("parallel",)),
        cost_estimate=pl.CostEstimate(
            flops=flops, transcendentals=0, bytes_accessed=bytes_accessed
        ),
    )(Y, Rw, Ru)

    if nblks_p != nblks:
        Z = Z[:, :, :nblks]
    return Z


# ----------------------------------------------------------------------------
# Forward wrapper (matches LsunFinalRotation2dLayer.forward)
# ----------------------------------------------------------------------------
def lsun_final_rotation_2d(X, angles, mus, stride, no_dc_leakage=False):
    nS, nrows, ncols, C = X.shape
    nDecs = stride[0] * stride[1]
    ps = math.ceil(nDecs / 2.0)
    pa = math.floor(nDecs / 2.0)
    assert C == ps + pa
    nblks = nrows * ncols

    nAngW = ps * (ps - 1) // 2
    angW = angles[:, :nAngW]
    angU = angles[:, nAngW:]
    musW = mus[:, :ps]
    musU = mus[:, ps:]

    if no_dc_leakage:
        musW = musW.at[:, 0].set(1.0)
        angW = angW.at[:, : ps - 1].set(0.0)

    # Per-block rotation matrices, built in f32 (setup glue).
    Rw = _orth_mtx_gen(angW, musW)                      # (nblks, ps, ps)
    Ru = _orth_mtx_gen(angU, musU)                      # (nblks, pa, pa)
    # blocks-on-lanes layout for the kernel:  M'[p, q, b] = M[b, p, q]
    Rw_l = jnp.transpose(Rw, (1, 2, 0))                 # (ps, ps, nblks)
    Ru_l = jnp.transpose(Ru, (1, 2, 0))                 # (pa, pa, nblks)

    # X: (nS, nRows, nCols, C) -> (nS, C, nblks)  (blocks on the lane axis)
    Yl = jnp.transpose(X.reshape(nS, nblks, C), (0, 2, 1))

    Zl = _block_rotate(Yl, Rw_l, Ru_l, ps, pa)          # (nS, C, nblks)

    # back to (nSamples, nRows, nCols, nChs)
    Z = jnp.transpose(Zl, (0, 2, 1)).reshape(nS, nrows, ncols, C)
    return Z.astype(X.dtype)


# ----------------------------------------------------------------------------
# Pure-JAX reference (mirrors the torch code structure)
# ----------------------------------------------------------------------------
def _reference_forward(X, angles, mus, stride, no_dc_leakage=False):
    nS, nrows, ncols, C = X.shape
    nDecs = stride[0] * stride[1]
    ps = math.ceil(nDecs / 2.0)
    nAngW = ps * (ps - 1) // 2
    angW, angU = angles[:, :nAngW], angles[:, nAngW:]
    musW, musU = mus[:, :ps], mus[:, ps:]
    if no_dc_leakage:
        musW = musW.at[:, 0].set(1.0)
        angW = angW.at[:, : ps - 1].set(0.0)
    Rw = _orth_mtx_gen(angW, musW)
    Ru = _orth_mtx_gen(angU, musU)
    Y = jnp.transpose(X, (1, 2, 3, 0)).reshape(nrows * ncols, C, nS)
    Zs = jnp.einsum("bji,bjk->bik", Rw, Y[:, :ps, :])   # W0^T @ Ys
    Za = jnp.einsum("bji,bjk->bik", Ru, Y[:, ps:, :])   # U0^T @ Ya
    Z = jnp.concatenate([Zs, Za], axis=1).reshape(nrows, ncols, C, nS)
    return jnp.transpose(Z, (3, 0, 1, 2)).astype(X.dtype)


if __name__ == "__main__":
    # Small, module-consistent shapes (stride (4,4) -> nDecs=16, ps=pa=8).
    # Three configs exercise: single-step grid, multi-step 128-multiple tiles,
    # and the padded (non-divisible) block-count path.
    configs = [
        dict(stride=(4, 4), number_of_blocks=(4, 4), nSamples=2),
        dict(stride=(4, 4), number_of_blocks=(16, 32), nSamples=3),
        dict(stride=(4, 4), number_of_blocks=(10, 30), nSamples=2),
    ]

    fwd = jax.jit(lsun_final_rotation_2d, static_argnames=("stride", "no_dc_leakage"))

    key = jax.random.PRNGKey(0)
    ok = True
    for cfg in configs:
        stride = cfg["stride"]
        nrows, ncols = cfg["number_of_blocks"]
        nS = cfg["nSamples"]
        nDecs = stride[0] * stride[1]
        ps = math.ceil(nDecs / 2.0)
        pa = math.floor(nDecs / 2.0)
        nblks = nrows * ncols
        nAngles = ps * (ps - 1) // 2 + pa * (pa - 1) // 2

        key, kx, ka, km = jax.random.split(key, 4)
        X = jax.random.normal(kx, (nS, nrows, ncols, nDecs), dtype=jnp.float32)
        # Module __init__ uses zero angles / unit mus; use deterministic nontrivial
        # values (as the angles/mus setters would) to exercise the rotation path.
        angles = 0.1 * jax.random.normal(ka, (nblks, nAngles), dtype=jnp.float32)
        mus = jnp.where(
            jax.random.bernoulli(km, 0.5, (nblks, nDecs)), 1.0, -1.0
        ).astype(jnp.float32)

        for no_dc in (False, True):
            Z = fwd(X, angles, mus, stride=stride, no_dc_leakage=no_dc)
            Z = jax.block_until_ready(Z)
            Z_ref = _reference_forward(X, angles, mus, stride, no_dc_leakage=no_dc)
            ok = ok and np.allclose(
                np.asarray(Z), np.asarray(Z_ref), rtol=1e-5, atol=1e-5
            )
            ok = ok and (Z.shape == X.shape) and (Z.dtype == X.dtype)

    if ok:
        print("KERNEL_OK")
    else:
        raise SystemExit("mismatch vs reference")
</pallas_src>

<mosaic_0001>
module attributes {stable_mosaic.version = 11 : i64} {
  func.func @_blk_rot_kernel(%arg0: i32, %arg1: memref<2x16x16xf32, #tpu.memory_space<vmem>>, %arg2: memref<8x8x16xf32, #tpu.memory_space<vmem>>, %arg3: memref<8x8x16xf32, #tpu.memory_space<vmem>>, %arg4: memref<2x16x16xf32, #tpu.memory_space<vmem>>) attributes {dimension_semantics = [#tpu.dimension_semantics<parallel>], iteration_bounds = array<i64: 1>, scalar_prefetch = 0 : i64, scratch_operands = 0 : i64, tpu.core_type = #tpu.core_type<tc>, window_params = [{transform_indices = @transform_0, window_bounds = array<i64: 2, 16, 16>}, {transform_indices = @transform_1, window_bounds = array<i64: 8, 8, 16>}, {transform_indices = @transform_2, window_bounds = array<i64: 8, 8, 16>}, {transform_indices = @transform_3, window_bounds = array<i64: 2, 16, 16>}]} {
    %c0 = arith.constant 0 : index
    %c0_0 = arith.constant 0 : index
    %c0_1 = arith.constant 0 : index
    %0 = vector.load %arg1[%c0, %c0_0, %c0_1] : memref<2x16x16xf32, #tpu.memory_space<vmem>>, vector<2x16x16xf32>
    %c0_2 = arith.constant 0 : index
    %c0_3 = arith.constant 0 : index
    %c0_4 = arith.constant 0 : index
    %1 = vector.load %arg2[%c0_2, %c0_3, %c0_4] : memref<8x8x16xf32, #tpu.memory_space<vmem>>, vector<8x8x16xf32>
    %c0_5 = arith.constant 0 : index
    %c0_6 = arith.constant 0 : index
    %c0_7 = arith.constant 0 : index
    %2 = vector.load %arg3[%c0_5, %c0_6, %c0_7] : memref<8x8x16xf32, #tpu.memory_space<vmem>>, vector<8x8x16xf32>
    %3 = vector.extract_strided_slice %0 {offsets = [0, 0, 0], sizes = [2, 1, 16], strides = [1, 1, 1]} : vector<2x16x16xf32> to vector<2x1x16xf32>
    %4 = vector.shape_cast %3 : vector<2x1x16xf32> to vector<2x16xf32>
    %5 = vector.shape_cast %4 : vector<2x16xf32> to vector<2x1x16xf32>
    %6 = vector.extract_strided_slice %1 {offsets = [0, 0, 0], sizes = [1, 8, 16], strides = [1, 1, 1]} : vector<8x8x16xf32> to vector<1x8x16xf32>
    %7 = vector.shape_cast %6 : vector<1x8x16xf32> to vector<8x16xf32>
    %8 = vector.shape_cast %7 : vector<8x16xf32> to vector<1x8x16xf32>
    %9 = vector.broadcast %5 : vector<2x1x16xf32> to vector<2x8x16xf32>
    %10 = vector.broadcast %8 : vector<1x8x16xf32> to vector<2x8x16xf32>
    %11 = arith.mulf %9, %10 : vector<2x8x16xf32>
    %12 = vector.extract_strided_slice %0 {offsets = [0, 1, 0], sizes = [2, 1, 16], strides = [1, 1, 1]} : vector<2x16x16xf32> to vector<2x1x16xf32>
    %13 = vector.shape_cast %12 : vector<2x1x16xf32> to vector<2x16xf32>
    %14 = vector.shape_cast %13 : vector<2x16xf32> to vector<2x1x16xf32>
    %15 = vector.extract_strided_slice %1 {offsets = [1, 0, 0], sizes = [1, 8, 16], strides = [1, 1, 1]} : vector<8x8x16xf32> to vector<1x8x16xf32>
    %16 = vector.shape_cast %15 : vector<1x8x16xf32> to vector<8x16xf32>
    %17 = vector.shape_cast %16 : vector<8x16xf32> to vector<1x8x16xf32>
    %18 = vector.broadcast %14 : vector<2x1x16xf32> to vector<2x8x16xf32>
    %19 = vector.broadcast %17 : vector<1x8x16xf32> to vector<2x8x16xf32>
    %20 = arith.mulf %18, %19 : vector<2x8x16xf32>
    %21 = arith.addf %11, %20 : vector<2x8x16xf32>
    %22 = vector.extract_strided_slice %0 {offsets = [0, 2, 0], sizes = [2, 1, 16], strides = [1, 1, 1]} : vector<2x16x16xf32> to vector<2x1x16xf32>
    %23 = vector.shape_cast %22 : vector<2x1x16xf32> to vector<2x16xf32>
    %24 = vector.shape_cast %23 : vector<2x16xf32> to vector<2x1x16xf32>
    %25 = vector.extract_strided_slice %1 {offsets = [2, 0, 0], sizes = [1, 8, 16], strides = [1, 1, 1]} : vector<8x8x16xf32> to vector<1x8x16xf32>
    %26 = vector.shape_cast %25 : vector<1x8x16xf32> to vector<8x16xf32>
    %27 = vector.shape_cast %26 : vector<8x16xf32> to vector<1x8x16xf32>
    %28 = vector.broadcast %24 : vector<2x1x16xf32> to vector<2x8x16xf32>
    %29 = vector.broadcast %27 : vector<1x8x16xf32> to vector<2x8x16xf32>
    %30 = arith.mulf %28, %29 : vector<2x8x16xf32>
    %31 = arith.addf %21, %30 : vector<2x8x16xf32>
    %32 = vector.extract_strided_slice %0 {offsets = [0, 3, 0], sizes = [2, 1, 16], strides = [1, 1, 1]} : vector<2x16x16xf32> to vector<2x1x16xf32>
    %33 = vector.shape_cast %32 : vector<2x1x16xf32> to vector<2x16xf32>
    %34 = vector.shape_cast %33 : vector<2x16xf32> to vector<2x1x16xf32>
    %35 = vector.extract_strided_slice %1 {offsets = [3, 0, 0], sizes = [1, 8, 16], strides = [1, 1, 1]} : vector<8x8x16xf32> to vector<1x8x16xf32>
    %36 = vector.shape_cast %35 : vector<1x8x16xf32> to vector<8x16xf32>
    %37 = vector.shape_cast %36 : vector<8x16xf32> to vector<1x8x16xf32>
    %38 = vector.broadcast %34 : vector<2x1x16xf32> to vector<2x8x16xf32>
    %39 = vector.broadcast %37 : vector<1x8x16xf32> to vector<2x8x16xf32>
    %40 = arith.mulf %38, %39 : vector<2x8x16xf32>
    %41 = arith.addf %31, %40 : vector<2x8x16xf32>
    %42 = vector.extract_strided_slice %0 {offsets = [0, 4, 0], sizes = [2, 1, 16], strides = [1, 1, 1]} : vector<2x16x16xf32> to vector<2x1x16xf32>
    %43 = vector.shape_cast %42 : vector<2x1x16xf32> to vector<2x16xf32>
    %44 = vector.shape_cast %43 : vector<2x16xf32> to vector<2x1x16xf32>
    %45 = vector.extract_strided_slice %1 {offsets = [4, 0, 0], sizes = [1, 8, 16], strides = [1, 1, 1]} : vector<8x8x16xf32> to vector<1x8x16xf32>
    %46 = vector.shape_cast %45 : vector<1x8x16xf32> to vector<8x16xf32>
    %47 = vector.shape_cast %46 : vector<8x16xf32> to vector<1x8x16xf32>
    %48 = vector.broadcast %44 : vector<2x1x16xf32> to vector<2x8x16xf32>
    %49 = vector.broadcast %47 : vector<1x8x16xf32> to vector<2x8x16xf32>
    %50 = arith.mulf %48, %49 : vector<2x8x16xf32>
    %51 = arith.addf %41, %50 : vector<2x8x16xf32>
    %52 = vector.extract_strided_slice %0 {offsets = [0, 5, 0], sizes = [2, 1, 16], strides = [1, 1, 1]} : vector<2x16x16xf32> to vector<2x1x16xf32>
    %53 = vector.shape_cast %52 : vector<2x1x16xf32> to vector<2x16xf32>
    %54 = vector.shape_cast %53 : vector<2x16xf32> to vector<2x1x16xf32>
    %55 = vector.extract_strided_slice %1 {offsets = [5, 0, 0], sizes = [1, 8, 16], strides = [1, 1, 1]} : vector<8x8x16xf32> to vector<1x8x16xf32>
    %56 = vector.shape_cast %55 : vector<1x8x16xf32> to vector<8x16xf32>
    %57 = vector.shape_cast %56 : vector<8x16xf32> to vector<1x8x16xf32>
    %58 = vector.broadcast %54 : vector<2x1x16xf32> to vector<2x8x16xf32>
    %59 = vector.broadcast %57 : vector<1x8x16xf32> to vector<2x8x16xf32>
    %60 = arith.mulf %58, %59 : vector<2x8x16xf32>
    %61 = arith.addf %51, %60 : vector<2x8x16xf32>
    %62 = vector.extract_strided_slice %0 {offsets = [0, 6, 0], sizes = [2, 1, 16], strides = [1, 1, 1]} : vector<2x16x16xf32> to vector<2x1x16xf32>
    %63 = vector.shape_cast %62 : vector<2x1x16xf32> to vector<2x16xf32>
    %64 = vector.shape_cast %63 : vector<2x16xf32> to vector<2x1x16xf32>
    %65 = vector.extract_strided_slice %1 {offsets = [6, 0, 0], sizes = [1, 8, 16], strides = [1, 1, 1]} : vector<8x8x16xf32> to vector<1x8x16xf32>
    %66 = vector.shape_cast %65 : vector<1x8x16xf32> to vector<8x16xf32>
    %67 = vector.shape_cast %66 : vector<8x16xf32> to vector<1x8x16xf32>
    %68 = vector.broadcast %64 : vector<2x1x16xf32> to vector<2x8x16xf32>
    %69 = vector.broadcast %67 : vector<1x8x16xf32> to vector<2x8x16xf32>
    %70 = arith.mulf %68, %69 : vector<2x8x16xf32>
    %71 = arith.addf %61, %70 : vector<2x8x16xf32>
    %72 = vector.extract_strided_slice %0 {offsets = [0, 7, 0], sizes = [2, 1, 16], strides = [1, 1, 1]} : vector<2x16x16xf32> to vector<2x1x16xf32>
    %73 = vector.shape_cast %72 : vector<2x1x16xf32> to vector<2x16xf32>
    %74 = vector.shape_cast %73 : vector<2x16xf32> to vector<2x1x16xf32>
    %75 = vector.extract_strided_slice %1 {offsets = [7, 0, 0], sizes = [1, 8, 16], strides = [1, 1, 1]} : vector<8x8x16xf32> to vector<1x8x16xf32>
    %76 = vector.shape_cast %75 : vector<1x8x16xf32> to vector<8x16xf32>
    %77 = vector.shape_cast %76 : vector<8x16xf32> to vector<1x8x16xf32>
    %78 = vector.broadcast %74 : vector<2x1x16xf32> to vector<2x8x16xf32>
    %79 = vector.broadcast %77 : vector<1x8x16xf32> to vector<2x8x16xf32>
    %80 = arith.mulf %78, %79 : vector<2x8x16xf32>
    %81 = arith.addf %71, %80 : vector<2x8x16xf32>
    %82 = vector.extract_strided_slice %0 {offsets = [0, 8, 0], sizes = [2, 1, 16], strides = [1, 1, 1]} : vector<2x16x16xf32> to vector<2x1x16xf32>
    %83 = vector.shape_cast %82 : vector<2x1x16xf32> to vector<2x16xf32>
    %84 = vector.shape_cast %83 : vector<2x16xf32> to vector<2x1x16xf32>
    %85 = vector.extract_strided_slice %2 {offsets = [0, 0, 0], sizes = [1, 8, 16], strides = [1, 1, 1]} : vector<8x8x16xf32> to vector<1x8x16xf32>
    %86 = vector.shape_cast %85 : vector<1x8x16xf32> to vector<8x16xf32>
    %87 = vector.shape_cast %86 : vector<8x16xf32> to vector<1x8x16xf32>
    %88 = vector.broadcast %84 : vector<2x1x16xf32> to vector<2x8x16xf32>
    %89 = vector.broadcast %87 : vector<1x8x16xf32> to vector<2x8x16xf32>
    %90 = arith.mulf %88, %89 : vector<2x8x16xf32>
    %91 = vector.extract_strided_slice %0 {offsets = [0, 9, 0], sizes = [2, 1, 16], strides = [1, 1, 1]} : vector<2x16x16xf32> to vector<2x1x16xf32>
    %92 = vector.shape_cast %91 : vector<2x1x16xf32> to vector<2x16xf32>
    %93 = vector.shape_cast %92 : vector<2x16xf32> to vector<2x1x16xf32>
    %94 = vector.extract_strided_slice %2 {offsets = [1, 0, 0], sizes = [1, 8, 16], strides = [1, 1, 1]} : vector<8x8x16xf32> to vector<1x8x16xf32>
    %95 = vector.shape_cast %94 : vector<1x8x16xf32> to vector<8x16xf32>
    %96 = vector.shape_cast %95 : vector<8x16xf32> to vector<1x8x16xf32>
    %97 = vector.broadcast %93 : vector<2x1x16xf32> to vector<2x8x16xf32>
    %98 = vector.broadcast %96 : vector<1x8x16xf32> to vector<2x8x16xf32>
    %99 = arith.mulf %97, %98 : vector<2x8x16xf32>
    %100 = arith.addf %90, %99 : vector<2x8x16xf32>
    %101 = vector.extract_strided_slice %0 {offsets = [0, 10, 0], sizes = [2, 1, 16], strides = [1, 1, 1]} : vector<2x16x16xf32> to vector<2x1x16xf32>
    %102 = vector.shape_cast %101 : vector<2x1x16xf32> to vector<2x16xf32>
    %103 = vector.shape_cast %102 : vector<2x16xf32> to vector<2x1x16xf32>
    %104 = vector.extract_strided_slice %2 {offsets = [2, 0, 0], sizes = [1, 8, 16], strides = [1, 1, 1]} : vector<8x8x16xf32> to vector<1x8x16xf32>
    %105 = vector.shape_cast %104 : vector<1x8x16xf32> to vector<8x16xf32>
    %106 = vector.shape_cast %105 : vector<8x16xf32> to vector<1x8x16xf32>
    %107 = vector.broadcast %103 : vector<2x1x16xf32> to vector<2x8x16xf32>
    %108 = vector.broadcast %106 : vector<1x8x16xf32> to vector<2x8x16xf32>
    %109 = arith.mulf %107, %108 : vector<2x8x16xf32>
    %110 = arith.addf %100, %109 : vector<2x8x16xf32>
    %111 = vector.extract_strided_slice %0 {offsets = [0, 11, 0], sizes = [2, 1, 16], strides = [1, 1, 1]} : vector<2x16x16xf32> to vector<2x1x16xf32>
    %112 = vector.shape_cast %111 : vector<2x1x16xf32> to vector<2x16xf32>
    %113 = vector.shape_cast %112 : vector<2x16xf32> to vector<2x1x16xf32>
    %114 = vector.extract_strided_slice %2 {offsets = [3, 0, 0], sizes = [1, 8, 16], strides = [1, 1, 1]} : vector<8x8x16xf32> to vector<1x8x16xf32>
    %115 = vector.shape_cast %114 : vector<1x8x16xf32> to vector<8x16xf32>
    %116 = vector.shape_cast %115 : vector<8x16xf32> to vector<1x8x16xf32>
    %117 = vector.broadcast %113 : vector<2x1x16xf32> to vector<2x8x16xf32>
    %118 = vector.broadcast %116 : vector<1x8x16xf32> to vector<2x8x16xf32>
    %119 = arith.mulf %117, %118 : vector<2x8x16xf32>
    %120 = arith.addf %110, %119 : vector<2x8x16xf32>
    %121 = vector.extract_strided_slice %0 {offsets = [0, 12, 0], sizes = [2, 1, 16], strides = [1, 1, 1]} : vector<2x16x16xf32> to vector<2x1x16xf32>
    %122 = vector.shape_cast %121 : vector<2x1x16xf32> to vector<2x16xf32>
    %123 = vector.shape_cast %122 : vector<2x16xf32> to vector<2x1x16xf32>
    %124 = vector.extract_strided_slice %2 {offsets = [4, 0, 0], sizes = [1, 8, 16], strides = [1, 1, 1]} : vector<8x8x16xf32> to vector<1x8x16xf32>
    %125 = vector.shape_cast %124 : vector<1x8x16xf32> to vector<8x16xf32>
    %126 = vector.shape_cast %125 : vector<8x16xf32> to vector<1x8x16xf32>
    %127 = vector.broadcast %123 : vector<2x1x16xf32> to vector<2x8x16xf32>
    %128 = vector.broadcast %126 : vector<1x8x16xf32> to vector<2x8x16xf32>
    %129 = arith.mulf %127, %128 : vector<2x8x16xf32>
    %130 = arith.addf %120, %129 : vector<2x8x16xf32>
    %131 = vector.extract_strided_slice %0 {offsets = [0, 13, 0], sizes = [2, 1, 16], strides = [1, 1, 1]} : vector<2x16x16xf32> to vector<2x1x16xf32>
    %132 = vector.shape_cast %131 : vector<2x1x16xf32> to vector<2x16xf32>
    %133 = vector.shape_cast %132 : vector<2x16xf32> to vector<2x1x16xf32>
    %134 = vector.extract_strided_slice %2 {offsets = [5, 0, 0], sizes = [1, 8, 16], strides = [1, 1, 1]} : vector<8x8x16xf32> to vector<1x8x16xf32>
    %135 = vector.shape_cast %134 : vector<1x8x16xf32> to vector<8x16xf32>
    %136 = vector.shape_cast %135 : vector<8x16xf32> to vector<1x8x16xf32>
    %137 = vector.broadcast %133 : vector<2x1x16xf32> to vector<2x8x16xf32>
    %138 = vector.broadcast %136 : vector<1x8x16xf32> to vector<2x8x16xf32>
    %139 = arith.mulf %137, %138 : vector<2x8x16xf32>
    %140 = arith.addf %130, %139 : vector<2x8x16xf32>
    %141 = vector.extract_strided_slice %0 {offsets = [0, 14, 0], sizes = [2, 1, 16], strides = [1, 1, 1]} : vector<2x16x16xf32> to vector<2x1x16xf32>
    %142 = vector.shape_cast %141 : vector<2x1x16xf32> to vector<2x16xf32>
    %143 = vector.shape_cast %142 : vector<2x16xf32> to vector<2x1x16xf32>
    %144 = vector.extract_strided_slice %2 {offsets = [6, 0, 0], sizes = [1, 8, 16], strides = [1, 1, 1]} : vector<8x8x16xf32> to vector<1x8x16xf32>
    %145 = vector.shape_cast %144 : vector<1x8x16xf32> to vector<8x16xf32>
    %146 = vector.shape_cast %145 : vector<8x16xf32> to vector<1x8x16xf32>
    %147 = vector.broadcast %143 : vector<2x1x16xf32> to vector<2x8x16xf32>
    %148 = vector.broadcast %146 : vector<1x8x16xf32> to vector<2x8x16xf32>
    %149 = arith.mulf %147, %148 : vector<2x8x16xf32>
    %150 = arith.addf %140, %149 : vector<2x8x16xf32>
    %151 = vector.extract_strided_slice %0 {offsets = [0, 15, 0], sizes = [2, 1, 16], strides = [1, 1, 1]} : vector<2x16x16xf32> to vector<2x1x16xf32>
    %152 = vector.shape_cast %151 : vector<2x1x16xf32> to vector<2x16xf32>
    %153 = vector.shape_cast %152 : vector<2x16xf32> to vector<2x1x16xf32>
    %154 = vector.extract_strided_slice %2 {offsets = [7, 0, 0], sizes = [1, 8, 16], strides = [1, 1, 1]} : vector<8x8x16xf32> to vector<1x8x16xf32>
    %155 = vector.shape_cast %154 : vector<1x8x16xf32> to vector<8x16xf32>
    %156 = vector.shape_cast %155 : vector<8x16xf32> to vector<1x8x16xf32>
    %157 = vector.broadcast %153 : vector<2x1x16xf32> to vector<2x8x16xf32>
    %158 = vector.broadcast %156 : vector<1x8x16xf32> to vector<2x8x16xf32>
    %159 = arith.mulf %157, %158 : vector<2x8x16xf32>
    %160 = arith.addf %150, %159 : vector<2x8x16xf32>
    %161 = tpu.concatenate %81, %160 in 1 : vector<2x8x16xf32>, vector<2x8x16xf32> -> vector<2x16x16xf32>
    %c0_8 = arith.constant 0 : index
    %c0_9 = arith.constant 0 : index
    %c0_10 = arith.constant 0 : index
    %162 = vector.load %arg4[%c0_8, %c0_9, %c0_10] : memref<2x16x16xf32, #tpu.memory_space<vmem>>, vector<2x16x16xf32>
    tpu.vector_store %arg4[%c0_8, %c0_9, %c0_10], %161 {strides = array<i32>} : memref<2x16x16xf32, #tpu.memory_space<vmem>>, vector<2x16x16xf32>,
    return
  }
  func.func @transform_0(%arg0: i32) -> (i32, i32, i32) {
    %c0_i32 = arith.constant 0 : i32
    %c0_i32_0 = arith.constant 0 : i32
    %c0_i32_1 = arith.constant 0 : i32
    return %c0_i32, %c0_i32_0, %arg0 : i32, i32, i32
  }
  func.func @transform_1(%arg0: i32) -> (i32, i32, i32) {
    %c0_i32 = arith.constant 0 : i32
    %c0_i32_0 = arith.constant 0 : i32
    %c0_i32_1 = arith.constant 0 : i32
    return %c0_i32, %c0_i32_0, %arg0 : i32, i32, i32
  }
  func.func @transform_2(%arg0: i32) -> (i32, i32, i32) {
    %c0_i32 = arith.constant 0 : i32
    %c0_i32_0 = arith.constant 0 : i32
    %c0_i32_1 = arith.constant 0 : i32
    return %c0_i32, %c0_i32_0, %arg0 : i32, i32, i32
  }
  func.func @transform_3(%arg0: i32) -> (i32, i32, i32) {
    %c0_i32 = arith.constant 0 : i32
    %c0_i32_0 = arith.constant 0 : i32
    %c0_i32_1 = arith.constant 0 : i32
    return %c0_i32, %c0_i32_0, %arg0 : i32, i32, i32
  }
}

</mosaic_0001>

<llo_original>
// kernel: lsun_final_rotation_2d.1
$region0: #{lsun_final_rotation_2d.1}
  #allocation0 [shape = 'u32[]', space=smem, size = 0x4, offset = 0x4, fixed_abs, tag = 'smem constant byte address 0x4 - core index']
  #allocation1 [shape = 'u32[144,128]{1,0:T(1,128)}', space=vmem, size = 0x12000, scoped, tag = 'internal scratch']
  %s0 = inlined_call_operand.vmem [shape: f32[2,16,16], index: 0, kind: input, shape index: {}]
  %s1 = inlined_call_operand.vmem [shape: f32[8,8,16], index: 1, kind: input, shape index: {}]
  %s2 = inlined_call_operand.vmem [shape: f32[8,8,16], index: 2, kind: input, shape index: {}]
  %s3 = inlined_call_operand.vmem [shape: f32[2,16,16], index: 3, kind: output, shape index: {}]
  %s4 = sld [smem:[#allocation0]]
  $region22: #{lsun_final_rotation_2d.1} parent=0
    _
  %s6 = ssub.s32 1, %s4
  %s7 = scalar_select 0, %s6, %s4
  // Predicated region
  $region2: #{lsun_final_rotation_2d.1} parent=0 // pred_check
    _
  $region3: #{lsun_final_rotation_2d.1} parent=0 // pred_check_branch
    %9 = sbr.rel (0) target = $region5
  $region4: #{lsun_final_rotation_2d.1} parent=0 // pred_region
    _
  $region5: #{lsun_final_rotation_2d.1} parent=0 // pred_fallthru
    _
  // Predicated region
  $region6: #{lsun_final_rotation_2d.1} parent=0 // pred_check
    _
  $region7: #{lsun_final_rotation_2d.1} parent=0 // pred_check_branch
    %11 = sbr.rel (0) target = $region9
  $region8: #{lsun_final_rotation_2d.1} parent=0 // pred_region
    _
  $region9: #{lsun_final_rotation_2d.1} parent=0 // pred_fallthru
    _
  // Predicated region
  $region10: #{lsun_final_rotation_2d.1} parent=0 // pred_check
    _
  $region11: #{lsun_final_rotation_2d.1} parent=0 // pred_check_branch
    %13 = sbr.rel (0) target = $region13
  $region12: #{lsun_final_rotation_2d.1} parent=0 // pred_region
    _
  $region13: #{lsun_final_rotation_2d.1} parent=0 // pred_fallthru
    _
  %v14 = vld [vmem:[%s0] sm:$0xff]
  %v15 = vld [vmem:[%s0 + $0x8] sm:$0xff]
  %v16 = vld [vmem:[%s0 + $0x10] sm:$0xff]
  %v17 = vld [vmem:[%s0 + $0x18] sm:$0xff]
  %v18 = vld [vmem:[%s1] sm:$0xff]
  %v19 = vld [vmem:[%s1 + $0x8] sm:$0xff]
  %v20 = vld [vmem:[%s1 + $0x10] sm:$0xff]
  %v21 = vld [vmem:[%s1 + $0x18] sm:$0xff]
  %v22 = vld [vmem:[%s1 + $0x20] sm:$0xff]
  %v23 = vld [vmem:[%s1 + $0x28] sm:$0xff]
  %v24 = vld [vmem:[%s1 + $0x30] sm:$0xff]
  %v25 = vld [vmem:[%s1 + $0x38] sm:$0xff]
  %v26 = vld [vmem:[%s2] sm:$0xff]
  %v27 = vld [vmem:[%s2 + $0x8] sm:$0xff]
  %v28 = vld [vmem:[%s2 + $0x10] sm:$0xff]
  %v29 = vld [vmem:[%s2 + $0x18] sm:$0xff]
  %v30 = vld [vmem:[%s2 + $0x20] sm:$0xff]
  %v31 = vld [vmem:[%s2 + $0x28] sm:$0xff]
  %v32 = vld [vmem:[%s2 + $0x30] sm:$0xff]
  %v33 = vld [vmem:[%s2 + $0x38] sm:$0xff]
  %v34 = vlaneseq
  %v35 = vshrl.u32 %v34, 7
  %v36 = vsub.s32 0, %v35
  %v37 = vrot.slane %v14, %v36
  %v38 = vlaneseq
  %v39 = vshrl.u32 %v38, 7
  %v40 = vsub.s32 0, %v39
  %v41 = vrot.slane %v16, %v40
  %v42 = vmul.f32 %v37, %v18
  %v43 = vmul.f32 %v41, %v18
  %v44 = vlaneseq
  %v45 = vshrl.u32 %v44, 7
  %v46 = vsub.s32 1, %v45
  %v47 = vrot.slane %v14, %v46
  %v48 = vlaneseq
  %v49 = vshrl.u32 %v48, 7
  %v50 = vsub.s32 1, %v49
  %v51 = vrot.slane %v16, %v50
  %v52 = vmul.f32 %v47, %v19
  %v53 = vmul.f32 %v51, %v19
  %v54 = vadd.f32 %v42, %v52
  %v55 = vadd.f32 %v43, %v53
  %v56 = vlaneseq
  %v57 = vshrl.u32 %v56, 7
  %v58 = vsub.s32 2, %v57
  %v59 = vrot.slane %v14, %v58
  %v60 = vlaneseq
  %v61 = vshrl.u32 %v60, 7
  %v62 = vsub.s32 2, %v61
  %v63 = vrot.slane %v16, %v62
  %v64 = vmul.f32 %v59, %v20
  %v65 = vmul.f32 %v63, %v20
  %v66 = vadd.f32 %v54, %v64
  %v67 = vadd.f32 %v55, %v65
  %v68 = vlaneseq
  %v69 = vshrl.u32 %v68, 7
  %v70 = vsub.s32 3, %v69
  %v71 = vrot.slane %v14, %v70
  %v72 = vlaneseq
  %v73 = vshrl.u32 %v72, 7
  %v74 = vsub.s32 3, %v73
  %v75 = vrot.slane %v16, %v74
  %v76 = vmul.f32 %v71, %v21
  %v77 = vmul.f32 %v75, %v21
  %v78 = vadd.f32 %v66, %v76
  %v79 = vadd.f32 %v67, %v77
  %v80 = vlaneseq
  %v81 = vshrl.u32 %v80, 7
  %v82 = vsub.s32 4, %v81
  %v83 = vrot.slane %v14, %v82
  %v84 = vlaneseq
  %v85 = vshrl.u32 %v84, 7
  %v86 = vsub.s32 4, %v85
  %v87 = vrot.slane %v16, %v86
  %v88 = vmul.f32 %v83, %v22
  %v89 = vmul.f32 %v87, %v22
  %v90 = vadd.f32 %v78, %v88
  %v91 = vadd.f32 %v79, %v89
  %v92 = vlaneseq
  %v93 = vshrl.u32 %v92, 7
  %v94 = vsub.s32 5, %v93
  %v95 = vrot.slane %v14, %v94
  %v96 = vlaneseq
  %v97 = vshrl.u32 %v96, 7
  %v98 = vsub.s32 5, %v97
  %v99 = vrot.slane %v16, %v98
  %v100 = vmul.f32 %v95, %v23
  %v101 = vmul.f32 %v99, %v23
  %v102 = vadd.f32 %v90, %v100
  %v103 = vadd.f32 %v91, %v101
  %v104 = vlaneseq
  %v105 = vshrl.u32 %v104, 7
  %v106 = vsub.s32 6, %v105
  %v107 = vrot.slane %v14, %v106
  %v108 = vlaneseq
  %v109 = vshrl.u32 %v108, 7
  %v110 = vsub.s32 6, %v109
  %v111 = vrot.slane %v16, %v110
  %v112 = vmul.f32 %v107, %v24
  %v113 = vmul.f32 %v111, %v24
  %v114 = vadd.f32 %v102, %v112
  %v115 = vadd.f32 %v103, %v113
  %v116 = vlaneseq
  %v117 = vshrl.u32 %v116, 7
  %v118 = vsub.s32 7, %v117
  %v119 = vrot.slane %v14, %v118
  %v120 = vlaneseq
  %v121 = vshrl.u32 %v120, 7
  %v122 = vsub.s32 7, %v121
  %v123 = vrot.slane %v16, %v122
  %v124 = vmul.f32 %v119, %v25
  %v125 = vmul.f32 %v123, %v25
  %v126 = vadd.f32 %v114, %v124
  %v127 = vadd.f32 %v115, %v125
  %v128 = vlaneseq
  %v129 = vshrl.u32 %v128, 7
  %v130 = vsub.s32 0, %v129
  %v131 = vrot.slane %v15, %v130
  %v132 = vlaneseq
  %v133 = vshrl.u32 %v132, 7
  %v134 = vsub.s32 0, %v133
  %v135 = vrot.slane %v17, %v134
  %v136 = vmul.f32 %v131, %v26
  %v137 = vmul.f32 %v135, %v26
  %v138 = vlaneseq
  %v139 = vshrl.u32 %v138, 7
  %v140 = vsub.s32 1, %v139
  %v141 = vrot.slane %v15, %v140
  %v142 = vlaneseq
  %v143 = vshrl.u32 %v142, 7
  %v144 = vsub.s32 1, %v143
  %v145 = vrot.slane %v17, %v144
  %v146 = vmul.f32 %v141, %v27
  %v147 = vmul.f32 %v145, %v27
  %v148 = vadd.f32 %v136, %v146
  %v149 = vadd.f32 %v137, %v147
  %v150 = vlaneseq
  %v151 = vshrl.u32 %v150, 7
  %v152 = vsub.s32 2, %v151
  %v153 = vrot.slane %v15, %v152
  %v154 = vlaneseq
  %v155 = vshrl.u32 %v154, 7
  %v156 = vsub.s32 2, %v155
  %v157 = vrot.slane %v17, %v156
  %v158 = vmul.f32 %v153, %v28
  %v159 = vmul.f32 %v157, %v28
  %v160 = vadd.f32 %v148, %v158
  %v161 = vadd.f32 %v149, %v159
  %v162 = vlaneseq
  %v163 = vshrl.u32 %v162, 7
  %v164 = vsub.s32 3, %v163
  %v165 = vrot.slane %v15, %v164
  %v166 = vlaneseq
  %v167 = vshrl.u32 %v166, 7
  %v168 = vsub.s32 3, %v167
  %v169 = vrot.slane %v17, %v168
  %v170 = vmul.f32 %v165, %v29
  %v171 = vmul.f32 %v169, %v29
  %v172 = vadd.f32 %v160, %v170
  %v173 = vadd.f32 %v161, %v171
  %v174 = vlaneseq
  %v175 = vshrl.u32 %v174, 7
  %v176 = vsub.s32 4, %v175
  %v177 = vrot.slane %v15, %v176
  %v178 = vlaneseq
  %v179 = vshrl.u32 %v178, 7
  %v180 = vsub.s32 4, %v179
  %v181 = vrot.slane %v17, %v180
  %v182 = vmul.f32 %v177, %v30
  %v183 = vmul.f32 %v181, %v30
  %v184 = vadd.f32 %v172, %v182
  %v185 = vadd.f32 %v173, %v183
  %v186 = vlaneseq
  %v187 = vshrl.u32 %v186, 7
  %v188 = vsub.s32 5, %v187
  %v189 = vrot.slane %v15, %v188
  %v190 = vlaneseq
  %v191 = vshrl.u32 %v190, 7
  %v192 = vsub.s32 5, %v191
  %v193 = vrot.slane %v17, %v192
  %v194 = vmul.f32 %v189, %v31
  %v195 = vmul.f32 %v193, %v31
  %v196 = vadd.f32 %v184, %v194
  %v197 = vadd.f32 %v185, %v195
  %v198 = vlaneseq
  %v199 = vshrl.u32 %v198, 7
  %v200 = vsub.s32 6, %v199
  %v201 = vrot.slane %v15, %v200
  %v202 = vlaneseq
  %v203 = vshrl.u32 %v202, 7
  %v204 = vsub.s32 6, %v203
  %v205 = vrot.slane %v17, %v204
  %v206 = vmul.f32 %v201, %v32
  %v207 = vmul.f32 %v205, %v32
  %v208 = vadd.f32 %v196, %v206
  %v209 = vadd.f32 %v197, %v207
  %v210 = vlaneseq
  %v211 = vshrl.u32 %v210, 7
  %v212 = vsub.s32 7, %v211
  %v213 = vrot.slane %v15, %v212
  %v214 = vlaneseq
  %v215 = vshrl.u32 %v214, 7
  %v216 = vsub.s32 7, %v215
  %v217 = vrot.slane %v17, %v216
  %v218 = vmul.f32 %v213, %v33
  %v219 = vmul.f32 %v217, %v33
  %v220 = vadd.f32 %v208, %v218
  %v221 = vadd.f32 %v209, %v219
  %vm222 = vcmask 130048
  %223 = vst.msk [vmem:[%s3] sm:$0xff] %vm222, %v126
  %224 = vst.msk [vmem:[%s3 + $0x8] sm:$0xff] %vm222, %v220
  %225 = vst.msk [vmem:[%s3 + $0x10] sm:$0xff] %vm222, %v127
  %226 = vst.msk [vmem:[%s3 + $0x18] sm:$0xff] %vm222, %v221
  // Predicated region
  $region14: #{lsun_final_rotation_2d.1} parent=0 // pred_check
    _
  $region15: #{lsun_final_rotation_2d.1} parent=0 // pred_check_branch
    %228 = sbr.rel (0) target = $region17
  $region16: #{lsun_final_rotation_2d.1} parent=0 // pred_region
    _
  $region17: #{lsun_final_rotation_2d.1} parent=0 // pred_fallthru
    _
  // Predicated region
  $region18: #{lsun_final_rotation_2d.1} parent=0 // pred_check
    _
  $region19: #{lsun_final_rotation_2d.1} parent=0 // pred_check_branch
    %230 = sbr.rel (0) target = $region21
  $region20: #{lsun_final_rotation_2d.1} parent=0 // pred_region
    _
  $region21: #{lsun_final_rotation_2d.1} parent=0 // pred_fallthru
    _

</llo_original>
